<compile_context>
chip_gen: v7x
topology: tpu7x:2x2x1
jax: 0.10.0
libtpu: 0.0.40
codegen_flags: <defaults>
</compile_context>

<pallas_src>
import functools

import jax
import jax.numpy as jnp
from jax import lax
from jax.experimental import pallas as pl
from jax.experimental.pallas import tpu as pltpu

NEG = -1e30  # effectively -inf; exp underflows to exactly 0 (representable in bf16 too)


def _round_up(x, m):
    return (x + m - 1) // m * m


def _layernorm(x, gamma, beta, eps):
    mu = jnp.mean(x, axis=-1, keepdims=True)
    var = jnp.mean((x - mu) ** 2, axis=-1, keepdims=True)
    return (x - mu) * lax.rsqrt(var + eps) * gamma + beta


# ----------------------------------------------------------------------------
# Tiny one-shot kernel: kn = LayerNorm(K @ Wk + bk)  (computed once, not per tile)
# ----------------------------------------------------------------------------
def _proj_ln_kernel(x_ref, w_ref, b_ref, g_ref, beta_ref, out_ref):
    y = jnp.dot(x_ref[...], w_ref[...], preferred_element_type=jnp.float32) + b_ref[...]
    out_ref[...] = _layernorm(y, g_ref[...], beta_ref[...], 1e-12).astype(out_ref.dtype)


def _project_layernorm(x_bf16, w_bf16, b, g, beta, *, tile_rows=128):
    n, in_dim = x_bf16.shape
    dim = w_bf16.shape[1]
    grid = (n // tile_rows,)
    return pl.pallas_call(
        _proj_ln_kernel,
        grid=grid,
        in_specs=[
            pl.BlockSpec((tile_rows, in_dim), lambda i: (i, 0)),
            pl.BlockSpec(w_bf16.shape, lambda i: (0, 0)),
            pl.BlockSpec(b.shape, lambda i: (0, 0)),
            pl.BlockSpec(g.shape, lambda i: (0, 0)),
            pl.BlockSpec(beta.shape, lambda i: (0, 0)),
        ],
        out_specs=pl.BlockSpec((tile_rows, dim), lambda i: (i, 0)),
        out_shape=jax.ShapeDtypeStruct((n, dim), jnp.bfloat16),
        compiler_params=pltpu.CompilerParams(dimension_semantics=("parallel",)),
    )(x_bf16, w_bf16, b, g, beta)


# ----------------------------------------------------------------------------
# Main kernel: per Nq tile -> Q proj/LN, logits, softmax, topk gumbel-softmax, mask@V, fc
# ----------------------------------------------------------------------------
def selector_kernel(topk, obj_dim,
                    q_ref, kn_ref, v_ref,
                    wq_ref, bq_ref, gq_ref, betaq_ref,
                    kbias_ref, gumbel_ref, wfc_ref, bfc_ref,
                    out_ref):
    f32 = jnp.float32
    bf16 = jnp.bfloat16
    tq = q_ref.shape[0]

    # Q projection + LayerNorm: bf16 MXU operands, f32 accumulation / elementwise.
    q = jnp.dot(q_ref[...], wq_ref[...], preferred_element_type=f32) + bq_ref[...]
    qn = _layernorm(q, gq_ref[...], betaq_ref[...], 1e-12).astype(bf16)

    # logits = qn @ kn^T (transposed-RHS contraction, no materialized kn.T) plus the
    # precomputed {0, NEG} key-padding bias row (replaces per-tile iota/compare/select).
    logits = lax.dot_general(qn, kn_ref[...],
                             dimension_numbers=(((1,), (1,)), ((), ())),
                             preferred_element_type=f32)
    logits = logits + kbias_ref[...]

    # First softmax: exact normalization (probs feed the gumbel add downstream).
    logits = logits - jnp.max(logits, axis=-1, keepdims=True)
    e = jnp.exp(logits)
    probs = e / jnp.sum(e, axis=-1, keepdims=True)          # (TQ, NK_PAD), f32

    # All topk gumbel-softmax rounds at once: one batched softmax + one MXU dot.
    # x = probs + g is bounded above (probs in [0,1], gumbel <= ~13.8 since the
    # wrapper clamps uniform draws to [1e-6, 1-1e-6]), so the row-max subtraction
    # is skipped: exp cannot overflow in f32.  Padded key columns carry NEG in the
    # gumbel tensor, so exp underflows to exactly 0 there.
    x = probs[None, :, :] + gumbel_ref[...].astype(f32)      # (topk, TQ, NK_PAD)
    ex = jnp.exp(x)
    masks = ex * pl.reciprocal(jnp.sum(ex, axis=-1, keepdims=True), approx=True)

    masks2 = masks.reshape(topk * tq, -1).astype(bf16)
    segs = jnp.dot(masks2, v_ref[...], preferred_element_type=f32)  # (topk*TQ, obj)
    segs = segs.astype(bf16)

    # Final fc, fused: out = bfc + sum_t seg_t @ Wfc[t*obj:(t+1)*obj]
    # (static topk loop of K=obj_dim dots; avoids an in-kernel (topk,TQ,obj) ->
    #  (TQ, topk*obj) relayout/transpose).
    acc = jnp.broadcast_to(bfc_ref[...], out_ref.shape).astype(f32)
    for t in range(topk):
        acc = acc + jnp.dot(segs[t * tq:(t + 1) * tq, :],
                            wfc_ref[t * obj_dim:(t + 1) * obj_dim, :],
                            preferred_element_type=f32)
    out_ref[...] = acc


def selector_forward(Q, K, V, params, gumbel, *, topk, obj_dim, tile_q=None,
                     use_buffer_hints=True):
    Nq = Q.shape[0]
    Nk = K.shape[0]

    # Lane-dense padding of the key axis; Nq tiled over a "parallel" grid axis.
    NK_PAD = max(128, _round_up(Nk, 128))
    if tile_q is None:
        # 256 fills the 256-wide MXU M-dim on v6e/v7x and halves per-step grid
        # overhead; on v5e (4x128^2 MXU) pass tile_q=128 — TQ=128 already fills it.
        tile_q = 256 if Nq >= 256 else (128 if Nq >= 128 else _round_up(Nq, 8))
    TQ = tile_q
    Nq_pad = _round_up(Nq, TQ)
    grid = (Nq_pad // TQ,)

    bf16, f32 = jnp.bfloat16, jnp.float32

    # bf16 matmul operands are prepared host-side (halves their HBM traffic);
    # biases / LN params stay f32 (all elementwise math is f32 in-kernel).
    Qp = jnp.zeros((Nq_pad, obj_dim), bf16).at[:Nq].set(Q.astype(bf16))
    Kp = jnp.zeros((NK_PAD, obj_dim), bf16).at[:Nk].set(K.astype(bf16))
    Vp = jnp.zeros((NK_PAD, obj_dim), bf16).at[:Nk].set(V.astype(bf16))

    # Gumbel stream in bf16 (halves the dominant per-step DMA) with the key-padding
    # mask baked in: padded key columns = NEG (bf16 keeps f32's exponent range, and
    # exp(NEG) underflows to exactly 0).  Padded Q rows keep gumbel = 0 (harmless).
    Gp = jnp.zeros((topk, Nq_pad, NK_PAD), f32)
    if Nk < NK_PAD:
        Gp = Gp.at[:, :, Nk:].set(NEG)
    Gp = Gp.at[:, :Nq, :Nk].set(gumbel.astype(f32)).astype(bf16)
    # TODO(synk): if bit-exact host RNG reproducibility is not required, generate the
    # gumbel noise in-kernel with pltpu.prng_seed + pltpu.prng_random_bits and drop
    # this input (and its DMA) entirely.

    # {0, NEG} bias row for the logits softmax (replaces in-kernel masking).
    kbias = jnp.zeros((1, NK_PAD), f32)
    if Nk < NK_PAD:
        kbias = kbias.at[:, Nk:].set(NEG)

    wq = params["wq"].astype(bf16)
    wfc = params["wfc"].astype(bf16)

    # K projection + LayerNorm computed ONCE (tiny separate pallas_call) instead of
    # being recomputed for every Nq tile / every TensorCore inside the main kernel.
    kn = _project_layernorm(Kp, params["wk"].astype(bf16),
                            params["bk"], params["gk"], params["betak"])

    inputs = (Qp, kn, Vp,
              wq, params["bq"], params["gq"], params["betaq"],
              kbias, Gp, wfc, params["bfc"])

    # Generation-aware VMEM budget: 75% of physical capacity, capped at 96 MiB
    # (~96 MiB on v5e/v6e's 128 MiB, ~48 MiB on v7x's 64 MiB).  Scoped defaults
    # (16/32 MiB) are too tight for larger tiles.
    try:
        cap = int(pltpu.get_tpu_info().vmem_capacity_bytes)
        vmem_limit = max(32 << 20, min(96 << 20, (cap * 3) // 4))
    except Exception:  # pragma: no cover - info query unavailable
        vmem_limit = 48 << 20

    kernel = functools.partial(selector_kernel, topk, obj_dim)
    out_shape = jax.ShapeDtypeStruct((Nq_pad, obj_dim), f32)

    def build(plan):
        # plan = None (no buffering hints) or (replicated_bufs, gumbel_bufs).
        def rep(shape):
            n = len(shape)
            idx = lambda i, _n=n: (0,) * _n
            if plan is not None:
                # Constant-index operands: single-buffer to spare VMEM (v7x).
                return pl.BlockSpec(shape, idx, pipeline_mode=pl.Buffered(plan[0]))
            return pl.BlockSpec(shape, idx)

        if plan is not None:
            # The gumbel tile is the only per-step DMA of meaningful size: deepen it.
            g_spec = pl.BlockSpec((topk, TQ, NK_PAD), lambda i: (0, i, 0),
                                  pipeline_mode=pl.Buffered(plan[1]))
        else:
            g_spec = pl.BlockSpec((topk, TQ, NK_PAD), lambda i: (0, i, 0))

        in_specs = [
            pl.BlockSpec((TQ, obj_dim), lambda i: (i, 0)),            # Q tile
            rep(kn.shape), rep(Vp.shape),
            rep(wq.shape), rep(params["bq"].shape),
            rep(params["gq"].shape), rep(params["betaq"].shape),
            rep(kbias.shape),
            g_spec,
            rep(wfc.shape), rep(params["bfc"].shape),
        ]
        out_spec = pl.BlockSpec((TQ, obj_dim), lambda i: (i, 0))
        return pl.pallas_call(
            kernel,
            grid=grid,
            in_specs=in_specs,
            out_specs=out_spec,
            out_shape=out_shape,
            compiler_params=pltpu.CompilerParams(
                dimension_semantics=("parallel",),     # Nq tiles shard across TCs (v7x)
                vmem_limit_bytes=vmem_limit),
        )

    plans = []
    if use_buffer_hints and hasattr(pl, "Buffered"):
        plans += [(1, 3), (2, 3)]   # prefer single-buffered replicated operands
    plans.append(None)               # guaranteed-supported fallback

    out = None
    err = None
    for plan in plans:
        try:
            out = jax.block_until_ready(build(plan)(*inputs))
            break
        except Exception as e:  # buffering hints unsupported on this JAX/Mosaic
            err = e
            out = None
    if out is None:
        raise err
    return out[:Nq]


def selector_reference(Q, K, V, params, gumbel, *, matmul_dtype=jnp.float32):
    """Pure-JAX reference. With matmul_dtype=bf16 it mirrors the kernel's
    MXU operand precision (f32 accumulation, f32 elementwise math)."""
    eps = 1e-12
    f32 = jnp.float32
    c = lambda a: a.astype(matmul_dtype)
    q = jnp.dot(c(Q), c(params["wq"]), preferred_element_type=f32) + params["bq"]
    q = _layernorm(q, params["gq"], params["betaq"], eps)
    k = jnp.dot(c(K), c(params["wk"]), preferred_element_type=f32) + params["bk"]
    k = _layernorm(k, params["gk"], params["betak"], eps)
    logits = jnp.dot(c(q), c(k).T, preferred_element_type=f32)
    probs = jax.nn.softmax(logits, axis=-1)
    segs = []
    for t in range(gumbel.shape[0]):
        mask = jax.nn.softmax(probs + gumbel[t], axis=-1)
        segs.append(jnp.dot(c(mask), c(V), preferred_element_type=f32))
    sel = jnp.concatenate(segs, axis=-1)
    return jnp.dot(c(sel), c(params["wfc"]), preferred_element_type=f32) + params["bfc"]


if __name__ == "__main__":
    # Small, TPU-friendly shapes consistent with the module's forward.
    TOPK, OBJ_DIM, DIM = 2, 256, 128
    NQ, NK = 8, 8

    key = jax.random.PRNGKey(0)
    ks = jax.random.split(key, 10)

    Q = jax.random.normal(ks[0], (NQ, OBJ_DIM), jnp.float32)
    K = jax.random.normal(ks[1], (NK, OBJ_DIM), jnp.float32)
    V = jax.random.normal(ks[2], (NK, OBJ_DIM), jnp.float32)

    # Deterministic synthetic parameters (stored pre-transposed: x @ W + b).
    params = {
        "wq": jax.random.normal(ks[3], (OBJ_DIM, DIM), jnp.float32) * 0.02,
        "bq": jax.random.normal(ks[4], (1, DIM), jnp.float32) * 0.02,
        "gq": jnp.ones((1, DIM), jnp.float32),
        "betaq": jnp.zeros((1, DIM), jnp.float32),
        "wk": jax.random.normal(ks[5], (OBJ_DIM, DIM), jnp.float32) * 0.02,
        "bk": jax.random.normal(ks[6], (1, DIM), jnp.float32) * 0.02,
        "gk": jnp.ones((1, DIM), jnp.float32),
        "betak": jnp.zeros((1, DIM), jnp.float32),
        "wfc": jax.random.normal(ks[7], (TOPK * OBJ_DIM, OBJ_DIM), jnp.float32) * 0.02,
        "bfc": jax.random.normal(ks[8], (1, OBJ_DIM), jnp.float32) * 0.02,
    }

    # Gumbel noise g = -log(-log(U)), one draw per topk selection round, with U
    # clamped to [1e-6, 1-1e-6] (bounds g <= ~13.8, which the kernel relies on to
    # skip the second softmax's max-subtraction).
    # TODO(synk): F.gumbel_softmax's internal RNG has no in-kernel equivalent here;
    # noise is sampled host-side with jax.random and passed in.
    u = jax.random.uniform(ks[9], (TOPK, NQ, NK), jnp.float32,
                           minval=1e-6, maxval=1.0 - 1e-6)
    gumbel = -jnp.log(-jnp.log(u))

    out = selector_forward(Q, K, V, params, gumbel, topk=TOPK, obj_dim=OBJ_DIM)
    out = jax.block_until_ready(out)
    assert out.shape == (NQ, OBJ_DIM)

    # References consume the same bf16-quantized gumbel values the kernel sees, so
    # the comparison isolates matmul-operand precision only.
    g_used = gumbel.astype(jnp.bfloat16).astype(jnp.float32)

    # (1) Tight check against a reference evaluated at the same matmul-operand
    #     precision as the kernel (bf16 MXU operands, f32 accumulation).
    ref_bf16 = selector_reference(Q, K, V, params, g_used, matmul_dtype=jnp.bfloat16)
    assert jnp.allclose(out, ref_bf16, atol=2e-2, rtol=2e-2), "mismatch vs bf16-matmul reference"

    # (2) Loose sanity bound against the pure-f32 reference: bf16 operand drift is
    #     amplified through the softmax -> gumbel-softmax -> fc chain.
    ref_f32 = selector_reference(Q, K, V, params, g_used)
    assert jnp.allclose(out, ref_f32, atol=1e-1, rtol=1e-1), "excessive drift vs f32 reference"

    print("KERNEL_OK")
</pallas_src>

<mosaic_0001>
module attributes {stable_mosaic.version = 11 : i64} {
  func.func @_proj_ln_kernel(%arg0: i32, %arg1: memref<128x256xbf16, #tpu.memory_space<vmem>>, %arg2: memref<256x128xbf16, #tpu.memory_space<vmem>>, %arg3: memref<1x128xf32, #tpu.memory_space<vmem>>, %arg4: memref<1x128xf32, #tpu.memory_space<vmem>>, %arg5: memref<1x128xf32, #tpu.memory_space<vmem>>, %arg6: memref<128x128xbf16, #tpu.memory_space<vmem>>) attributes {dimension_semantics = [#tpu.dimension_semantics<parallel>], iteration_bounds = array<i64: 1>, scalar_prefetch = 0 : i64, scratch_operands = 0 : i64, tpu.core_type = #tpu.core_type<tc>, window_params = [{transform_indices = @transform_0, window_bounds = array<i64: 128, 256>}, {pipeline_mode = #tpu.pipeline_mode<synchronous>, transform_indices = @transform_1, window_bounds = array<i64: 256, 128>}, {pipeline_mode = #tpu.pipeline_mode<synchronous>, transform_indices = @transform_2, window_bounds = array<i64: 1, 128>}, {pipeline_mode = #tpu.pipeline_mode<synchronous>, transform_indices = @transform_3, window_bounds = array<i64: 1, 128>}, {pipeline_mode = #tpu.pipeline_mode<synchronous>, transform_indices = @transform_4, window_bounds = array<i64: 1, 128>}, {transform_indices = @transform_5, window_bounds = array<i64: 128, 128>}]} {
    %c0 = arith.constant 0 : index
    %c0_0 = arith.constant 0 : index
    %0 = vector.load %arg1[%c0, %c0_0] : memref<128x256xbf16, #tpu.memory_space<vmem>>, vector<128x256xbf16>
    %c0_1 = arith.constant 0 : index
    %c0_2 = arith.constant 0 : index
    %1 = vector.load %arg2[%c0_1, %c0_2] : memref<256x128xbf16, #tpu.memory_space<vmem>>, vector<256x128xbf16>
    %cst = arith.constant dense<0.000000e+00> : vector<128x128xf32>
    %2 = tpu.matmul %0, %1, %cst {dimension_numbers = #tpu.dot_dimension_numbers<[1], [0], [0], [1], [0, 0, 1, 1], [], []>} : vector<128x256xbf16>, vector<256x128xbf16>, vector<128x128xf32> -> vector<128x128xf32>
    %c0_3 = arith.constant 0 : index
    %c0_4 = arith.constant 0 : index
    %3 = vector.load %arg3[%c0_3, %c0_4] : memref<1x128xf32, #tpu.memory_space<vmem>>, vector<1x128xf32>
    %4 = vector.broadcast %3 : vector<1x128xf32> to vector<128x128xf32>
    %5 = arith.addf %2, %4 : vector<128x128xf32>
    %c0_5 = arith.constant 0 : index
    %c0_6 = arith.constant 0 : index
    %6 = vector.load %arg4[%c0_5, %c0_6] : memref<1x128xf32, #tpu.memory_space<vmem>>, vector<1x128xf32>
    %c0_7 = arith.constant 0 : index
    %c0_8 = arith.constant 0 : index
    %7 = vector.load %arg5[%c0_7, %c0_8] : memref<1x128xf32, #tpu.memory_space<vmem>>, vector<1x128xf32>
    %cst_9 = arith.constant dense<0.000000e+00> : vector<128xf32>
    %8 = vector.multi_reduction <add>, %5, %cst_9 [1] : vector<128x128xf32> to vector<128xf32>
    %9 = vector.shape_cast %8 : vector<128xf32> to vector<128x1xf32>
    %cst_10 = arith.constant 1.280000e+02 : f32
    %10 = vector.broadcast %cst_10 : f32 to vector<128x1xf32>
    %11 = arith.divf %9, %10 : vector<128x1xf32>
    %12 = vector.broadcast %11 : vector<128x1xf32> to vector<128x128xf32>
    %13 = arith.subf %5, %12 : vector<128x128xf32>
    %14 = arith.mulf %13, %13 : vector<128x128xf32>
    %cst_11 = arith.constant dense<0.000000e+00> : vector<128xf32>
    %15 = vector.multi_reduction <add>, %14, %cst_11 [1] : vector<128x128xf32> to vector<128xf32>
    %16 = vector.shape_cast %15 : vector<128xf32> to vector<128x1xf32>
    %cst_12 = arith.constant 1.280000e+02 : f32
    %17 = vector.broadcast %cst_12 : f32 to vector<128x1xf32>
    %18 = arith.divf %16, %17 : vector<128x1xf32>
    %19 = vector.broadcast %11 : vector<128x1xf32> to vector<128x128xf32>
    %20 = arith.subf %5, %19 : vector<128x128xf32>
    %cst_13 = arith.constant 9.99999996E-13 : f32
    %21 = vector.broadcast %cst_13 : f32 to vector<128x1xf32>
    %22 = arith.addf %18, %21 : vector<128x1xf32>
    %23 = math.rsqrt %22 : vector<128x1xf32>
    %24 = vector.broadcast %23 : vector<128x1xf32> to vector<128x128xf32>
    %25 = arith.mulf %20, %24 : vector<128x128xf32>
    %26 = vector.broadcast %6 : vector<1x128xf32> to vector<128x128xf32>
    %27 = arith.mulf %25, %26 : vector<128x128xf32>
    %28 = vector.broadcast %7 : vector<1x128xf32> to vector<128x128xf32>
    %29 = arith.addf %27, %28 : vector<128x128xf32>
    %30 = arith.truncf %29 : vector<128x128xf32> to vector<128x128xbf16>
    %c0_14 = arith.constant 0 : index
    %c0_15 = arith.constant 0 : index
    %31 = vector.load %arg6[%c0_14, %c0_15] : memref<128x128xbf16, #tpu.memory_space<vmem>>, vector<128x128xbf16>
    tpu.vector_store %arg6[%c0_14, %c0_15], %30 {strides = array<i32>} : memref<128x128xbf16, #tpu.memory_space<vmem>>, vector<128x128xbf16>,
    return
  }
  func.func @transform_0(%arg0: i32) -> (i32, i32) {
    %c0_i32 = arith.constant 0 : i32
    %c0_i32_0 = arith.constant 0 : i32
    return %arg0, %c0_i32 : i32, i32
  }
  func.func @transform_1(%arg0: i32) -> (i32, i32) {
    %c0_i32 = arith.constant 0 : i32
    %c0_i32_0 = arith.constant 0 : i32
    %c0_i32_1 = arith.constant 0 : i32
    return %c0_i32, %c0_i32_0 : i32, i32
  }
  func.func @transform_2(%arg0: i32) -> (i32, i32) {
    %c0_i32 = arith.constant 0 : i32
    %c0_i32_0 = arith.constant 0 : i32
    %c0_i32_1 = arith.constant 0 : i32
    return %c0_i32, %c0_i32_0 : i32, i32
  }
  func.func @transform_3(%arg0: i32) -> (i32, i32) {
    %c0_i32 = arith.constant 0 : i32
    %c0_i32_0 = arith.constant 0 : i32
    %c0_i32_1 = arith.constant 0 : i32
    return %c0_i32, %c0_i32_0 : i32, i32
  }
  func.func @transform_4(%arg0: i32) -> (i32, i32) {
    %c0_i32 = arith.constant 0 : i32
    %c0_i32_0 = arith.constant 0 : i32
    %c0_i32_1 = arith.constant 0 : i32
    return %c0_i32, %c0_i32_0 : i32, i32
  }
  func.func @transform_5(%arg0: i32) -> (i32, i32) {
    %c0_i32 = arith.constant 0 : i32
    %c0_i32_0 = arith.constant 0 : i32
    return %arg0, %c0_i32 : i32, i32
  }
}

</mosaic_0001>

<llo_original>
// kernel: tpu_custom_call.1
$region0: #{tpu_custom_call.1}
  #allocation0 [shape = 'u32[]', space=smem, size = 0x4, offset = 0x4, fixed_abs, tag = 'smem constant byte address 0x4 - core index']
  #allocation1 [shape = 'u32[144,128]{1,0:T(1,128)}', space=vmem, size = 0x12000, scoped, tag = 'internal scratch']
  %s0 = inlined_call_operand.hbm [shape: bf16[128,256], index: 0, kind: input, shape index: {}]
  %s1 = inlined_call_operand.hbm [shape: bf16[256,128], index: 1, kind: input, shape index: {}]
  %s2 = inlined_call_operand.vmem [shape: f32[1,128], index: 2, kind: input, shape index: {}]
  %s3 = inlined_call_operand.vmem [shape: f32[1,128], index: 3, kind: input, shape index: {}]
  %s4 = inlined_call_operand.vmem [shape: f32[1,128], index: 4, kind: input, shape index: {}]
  %s5 = inlined_call_operand.hbm [shape: bf16[128,128], index: 5, kind: output, shape index: {}]
  %s6 = sld [smem:[#allocation0]]
  $region38: #{tpu_custom_call.1} parent=0
    _
  %s8 = ssub.s32 1, %s6
  %s9 = scalar_select 0, %s8, %s6
  $region1: #{tpu_custom_call.1} parent=0
    #allocation2 [shape = 'u8[65536]{0}', space=vmem, size = 0x10000, scoped, tag = 'input window, operand 0, single buffered']
    #allocation3 [shape = 's32[1]{0}', space=sflag, size = 0x4, scoped, tag = 'scoped memory for tpu_custom_call.1']
    #allocation4 [shape = 's32[1]{0}', space=sflag, size = 0x4, scoped, tag = 'scoped memory for tpu_custom_call.1']
    #allocation5 [shape = 'u8[65536]{0}', space=vmem, size = 0x10000, scoped, tag = 'input window, operand 1, single buffered']
    #allocation6 [shape = 's32[1]{0}', space=sflag, size = 0x4, scoped, tag = 'scoped memory for tpu_custom_call.1']
    #allocation7 [shape = 'u8[32768]{0}', space=vmem, size = 0x8000, scoped, tag = 'output window, operand 0, single buffered']
    %10 = vsyncpa [#allocation3], 0
    %11 = vsyncpa [#allocation6], 0
    %12 = vsyncpa [#allocation4], 0
    // Predicated region
    $region2: #{tpu_custom_call.1} parent=1 // pred_check
      _
    $region3: #{tpu_custom_call.1} parent=1 // pred_check_branch
      %14 = sbr.rel (0) target = $region5
    $region4: #{tpu_custom_call.1} parent=1 // pred_region
      %s16 = ssub.s32 2048, 2048
      %17 = vsyncadd [#allocation3], %s16
      %s18 = sshll.u32 [#allocation2], 4
      %s19 = int_to_ptr.vmem [resolvable:$true] %s18
      %24 = dma.hbm_to_vmem [thread:$0]  %s0, 2048, %s19, [#allocation3], 128, 128, 8
    $region5: #{tpu_custom_call.1} parent=1 // pred_fallthru
      _
    // Predicated region
    $region6: #{tpu_custom_call.1} parent=1 // pred_check
      _
    $region7: #{tpu_custom_call.1} parent=1 // pred_check_branch
      %26 = sbr.rel (0) target = $region9
    $region8: #{tpu_custom_call.1} parent=1 // pred_region
      %s28 = ssub.s32 2048, 2048
      %29 = vsyncadd [#allocation6], %s28
      %s30 = sshll.u32 [#allocation5], 4
      %s31 = int_to_ptr.vmem [resolvable:$true] %s30
      %36 = dma.hbm_to_vmem [thread:$0]  %s1, 2048, %s31, [#allocation6], 64, 64, 4
    $region9: #{tpu_custom_call.1} parent=1 // pred_fallthru
      _
    // Predicated region
    $region10: #{tpu_custom_call.1} parent=1 // pred_check
      _
    $region11: #{tpu_custom_call.1} parent=1 // pred_check_branch
      %38 = sbr.rel (0) target = $region13
    $region12: #{tpu_custom_call.1} parent=1 // pred_region
      _
    $region13: #{tpu_custom_call.1} parent=1 // pred_fallthru
      _
    // Predicated region
    $region14: #{tpu_custom_call.1} parent=1 // pred_check
      _
    $region15: #{tpu_custom_call.1} parent=1 // pred_check_branch
      %40 = sbr.rel (0) target = $region17
    $region16: #{tpu_custom_call.1} parent=1 // pred_region
      _
    $region17: #{tpu_custom_call.1} parent=1 // pred_fallthru
      _
    // Predicated region
    $region18: #{tpu_custom_call.1} parent=1 // pred_check
      _
    $region19: #{tpu_custom_call.1} parent=1 // pred_check_branch
      %42 = sbr.rel (0) target = $region21
    $region20: #{tpu_custom_call.1} parent=1 // pred_region
      _
    $region21: #{tpu_custom_call.1} parent=1 // pred_fallthru
      _
    // Predicated region
    $region22: #{tpu_custom_call.1} parent=1 // pred_check
      _
    $region23: #{tpu_custom_call.1} parent=1 // pred_check_branch
      %44 = sbr.rel (0) target = $region25
    $region24: #{tpu_custom_call.1} parent=1 // pred_region
      %45 = dma.done [#allocation3], 2048
    $region25: #{tpu_custom_call.1} parent=1 // pred_fallthru
      _
    // Predicated region
    $region26: #{tpu_custom_call.1} parent=1 // pred_check
      _
    $region27: #{tpu_custom_call.1} parent=1 // pred_check_branch
      %47 = sbr.rel (0) target = $region29
    $region28: #{tpu_custom_call.1} parent=1 // pred_region
      %48 = dma.done [#allocation6], 2048
    $region29: #{tpu_custom_call.1} parent=1 // pred_fallthru
      _
    %v50 = vld [vmem:[#allocation2] sm:$0xff]
    %v51 = vld [vmem:[#allocation2 + $0x8] sm:$0xff]
    %v52 = vld [vmem:[#allocation2 + $0x10] sm:$0xff]
    %v53 = vld [vmem:[#allocation2 + $0x18] sm:$0xff]
    %v54 = vld [vmem:[#allocation2 + $0x20] sm:$0xff]
    %v55 = vld [vmem:[#allocation2 + $0x28] sm:$0xff]
    %v56 = vld [vmem:[#allocation2 + $0x30] sm:$0xff]
    %v57 = vld [vmem:[#allocation2 + $0x38] sm:$0xff]
    %v58 = vld [vmem:[#allocation2 + $0x40] sm:$0xff]
    %v59 = vld [vmem:[#allocation2 + $0x48] sm:$0xff]
    %v60 = vld [vmem:[#allocation2 + $0x50] sm:$0xff]
    %v61 = vld [vmem:[#allocation2 + $0x58] sm:$0xff]
    %v62 = vld [vmem:[#allocation2 + $0x60] sm:$0xff]
    %v63 = vld [vmem:[#allocation2 + $0x68] sm:$0xff]
    %v64 = vld [vmem:[#allocation2 + $0x70] sm:$0xff]
    %v65 = vld [vmem:[#allocation2 + $0x78] sm:$0xff]
    %v66 = vld [vmem:[#allocation5] sm:$0xf]
    %v67 = vld [vmem:[#allocation5 + $0x4] sm:$0xf]
    %v68 = vld [vmem:[#allocation5 + $0x8] sm:$0xf]
    %v69 = vld [vmem:[#allocation5 + $0xc] sm:$0xf]
    %v70 = vld [vmem:[#allocation5 + $0x10] sm:$0xf]
    %v71 = vld [vmem:[#allocation5 + $0x14] sm:$0xf]
    %v72 = vld [vmem:[#allocation5 + $0x18] sm:$0xf]
    %v73 = vld [vmem:[#allocation5 + $0x1c] sm:$0xf]
    %v74 = vld [vmem:[#allocation5 + $0x20] sm:$0xf]
    %v75 = vld [vmem:[#allocation5 + $0x24] sm:$0xf]
    %v76 = vld [vmem:[#allocation5 + $0x28] sm:$0xf]
    %v77 = vld [vmem:[#allocation5 + $0x2c] sm:$0xf]
    %v78 = vld [vmem:[#allocation5 + $0x30] sm:$0xf]
    %v79 = vld [vmem:[#allocation5 + $0x34] sm:$0xf]
    %v80 = vld [vmem:[#allocation5 + $0x38] sm:$0xf]
    %v81 = vld [vmem:[#allocation5 + $0x3c] sm:$0xf]
    %v82 = vld [vmem:[#allocation5 + $0x40] sm:$0xf]
    %v83 = vld [vmem:[#allocation5 + $0x44] sm:$0xf]
    %v84 = vld [vmem:[#allocation5 + $0x48] sm:$0xf]
    %v85 = vld [vmem:[#allocation5 + $0x4c] sm:$0xf]
    %v86 = vld [vmem:[#allocation5 + $0x50] sm:$0xf]
    %v87 = vld [vmem:[#allocation5 + $0x54] sm:$0xf]
    %v88 = vld [vmem:[#allocation5 + $0x58] sm:$0xf]
    %v89 = vld [vmem:[#allocation5 + $0x5c] sm:$0xf]
    %v90 = vld [vmem:[#allocation5 + $0x60] sm:$0xf]
    %v91 = vld [vmem:[#allocation5 + $0x64] sm:$0xf]
    %v92 = vld [vmem:[#allocation5 + $0x68] sm:$0xf]
    %v93 = vld [vmem:[#allocation5 + $0x6c] sm:$0xf]
    %v94 = vld [vmem:[#allocation5 + $0x70] sm:$0xf]
    %v95 = vld [vmem:[#allocation5 + $0x74] sm:$0xf]
    %v96 = vld [vmem:[#allocation5 + $0x78] sm:$0xf]
    %v97 = vld [vmem:[#allocation5 + $0x7c] sm:$0xf]
    %v98 = vld [vmem:[%s2] sm:$0x1]
    %v100 = vlaneseq
    %v101 = vshrl.u32 %v100, 7
    %v102 = vsub.s32 0, %v101
    %v103 = vrot.slane %v98, %v102
    %v121 = vunpack.c.l.b16 %v50
    %v122 = vunpack.c.h.b16 %v50
    %v123 = vunpack.c.l.b16 %v51
    %v124 = vunpack.c.h.b16 %v51
    %v125 = vunpack.c.l.b16 %v52
    %v126 = vunpack.c.h.b16 %v52
    %v127 = vunpack.c.l.b16 %v53
    %v128 = vunpack.c.h.b16 %v53
    %v129 = vunpack.c.l.b16 %v54
    %v130 = vunpack.c.h.b16 %v54
    %v131 = vunpack.c.l.b16 %v55
    %v132 = vunpack.c.h.b16 %v55
    %v133 = vunpack.c.l.b16 %v56
    %v134 = vunpack.c.h.b16 %v56
    %v135 = vunpack.c.l.b16 %v57
    %v136 = vunpack.c.h.b16 %v57
    %v137 = vunpack.c.l.b16 %v58
    %v138 = vunpack.c.h.b16 %v58
    %v139 = vunpack.c.l.b16 %v59
    %v140 = vunpack.c.h.b16 %v59
    %v141 = vunpack.c.l.b16 %v60
    %v142 = vunpack.c.h.b16 %v60
    %v143 = vunpack.c.l.b16 %v61
    %v144 = vunpack.c.h.b16 %v61
    %v145 = vunpack.c.l.b16 %v62
    %v146 = vunpack.c.h.b16 %v62
    %v147 = vunpack.c.l.b16 %v63
    %v148 = vunpack.c.h.b16 %v63
    %v149 = vunpack.c.l.b16 %v64
    %v150 = vunpack.c.h.b16 %v64
    %v151 = vunpack.c.l.b16 %v65
    %v152 = vunpack.c.h.b16 %v65
    %v153 = vpack.c.b16 %v123, %v121
    %v154 = vpack.c.b16 %v124, %v122
    %v155 = vpack.c.b16 %v127, %v125
    %v156 = vpack.c.b16 %v128, %v126
    %v157 = vpack.c.b16 %v131, %v129
    %v158 = vpack.c.b16 %v132, %v130
    %v159 = vpack.c.b16 %v135, %v133
    %v160 = vpack.c.b16 %v136, %v134
    %v161 = vpack.c.b16 %v139, %v137
    %v162 = vpack.c.b16 %v140, %v138
    %v163 = vpack.c.b16 %v143, %v141
    %v164 = vpack.c.b16 %v144, %v142
    %v165 = vpack.c.b16 %v147, %v145
    %v166 = vpack.c.b16 %v148, %v146
    %v167 = vpack.c.b16 %v151, %v149
    %v168 = vpack.c.b16 %v152, %v150
    %v217 = vunpack.c.l.b16 %v66
    %v218 = vunpack.c.l.b16 %v67
    %v219 = vunpack.c.l.b16 %v68
    %v220 = vunpack.c.l.b16 %v69
    %v221 = vunpack.c.l.b16 %v70
    %v222 = vunpack.c.l.b16 %v71
    %v223 = vunpack.c.l.b16 %v72
    %v224 = vunpack.c.l.b16 %v73
    %v225 = vunpack.c.l.b16 %v74
    %v226 = vunpack.c.l.b16 %v75
    %v227 = vunpack.c.l.b16 %v76
    %v228 = vunpack.c.l.b16 %v77
    %v229 = vunpack.c.l.b16 %v78
    %v230 = vunpack.c.l.b16 %v79
    %v231 = vunpack.c.l.b16 %v80
    %v232 = vunpack.c.l.b16 %v81
    %v233 = vunpack.c.l.b16 %v82
    %v234 = vunpack.c.l.b16 %v83
    %v235 = vunpack.c.l.b16 %v84
    %v236 = vunpack.c.l.b16 %v85
    %v237 = vunpack.c.l.b16 %v86
    %v238 = vunpack.c.l.b16 %v87
    %v239 = vunpack.c.l.b16 %v88
    %v240 = vunpack.c.l.b16 %v89
    %v241 = vunpack.c.l.b16 %v90
    %v242 = vunpack.c.l.b16 %v91
    %v243 = vunpack.c.l.b16 %v92
    %v244 = vunpack.c.l.b16 %v93
    %v245 = vunpack.c.l.b16 %v94
    %v246 = vunpack.c.l.b16 %v95
    %v247 = vunpack.c.l.b16 %v96
    %v248 = vunpack.c.l.b16 %v97
    %v249 = vpack.c.b16 %v218, %v217
    %v250 = vpack.c.b16 %v220, %v219
    %v251 = vpack.c.b16 %v222, %v221
    %v252 = vpack.c.b16 %v224, %v223
    %v253 = vpack.c.b16 %v226, %v225
    %v254 = vpack.c.b16 %v228, %v227
    %v255 = vpack.c.b16 %v230, %v229
    %v256 = vpack.c.b16 %v232, %v231
    %v257 = vpack.c.b16 %v234, %v233
    %v258 = vpack.c.b16 %v236, %v235
    %v259 = vpack.c.b16 %v238, %v237
    %v260 = vpack.c.b16 %v240, %v239
    %v261 = vpack.c.b16 %v242, %v241
    %v262 = vpack.c.b16 %v244, %v243
    %v263 = vpack.c.b16 %v246, %v245
    %v264 = vpack.c.b16 %v248, %v247
    %281 = vmatprep.subr.bf16.mxu0 0
    %282 = vmatpush1.bf16.msra.mxu0 %v249
    %283 = vmatprep.subr.bf16.mxu0 0
    %284 = vmatpush1.bf16.msra.mxu0 %v250
    %285 = vmatprep.subr.bf16.mxu0 0
    %286 = vmatpush1.bf16.msra.mxu0 %v251
    %287 = vmatprep.subr.bf16.mxu0 0
    %288 = vmatpush1.bf16.msra.mxu0 %v252
    %289 = vmatprep.subr.bf16.mxu0 0
    %290 = vmatpush1.bf16.msra.mxu0 %v253
    %291 = vmatprep.subr.bf16.mxu0 0
    %292 = vmatpush1.bf16.msra.mxu0 %v254
    %293 = vmatprep.subr.bf16.mxu0 0
    %294 = vmatpush1.bf16.msra.mxu0 %v255
    %295 = vmatprep.subr.bf16.mxu0 0
    %296 = vmatpush1.bf16.msra.mxu0 %v256
    %297 = vmatprep.subr.bf16.mxu0 0
    %298 = vmatpush1.bf16.msra.mxu0 %v257
    %299 = vmatprep.subr.bf16.mxu0 0
    %300 = vmatpush1.bf16.msra.mxu0 %v258
    %301 = vmatprep.subr.bf16.mxu0 0
    %302 = vmatpush1.bf16.msra.mxu0 %v259
    %303 = vmatprep.subr.bf16.mxu0 0
    %304 = vmatpush1.bf16.msra.mxu0 %v260
    %305 = vmatprep.subr.bf16.mxu0 0
    %306 = vmatpush1.bf16.msra.mxu0 %v261
    %307 = vmatprep.subr.bf16.mxu0 0
    %308 = vmatpush1.bf16.msra.mxu0 %v262
    %309 = vmatprep.subr.bf16.mxu0 0
    %310 = vmatpush1.bf16.msra.mxu0 %v263
    %311 = vmatprep.subr.bf16.mxu0 0
    %312 = vmatpush1.bf16.msra.mxu0 %v264
    %313 = vmatprep.mubr.bf16.mxu0 %v154
    %314 = vmatmul.mubr.bf16.gmra.mrb[0].mxu0 %v153
    %v315 = vpop.f32.mrb[0].mxu0
    %v316 = vadd.f32 %v103, %v315
    %v317 = vpop.f32.mrb[0].mxu0
    %v318 = vpop.f32.mrb[0].mxu0
    %v319 = vadd.f32 %v103, %v318
    %v320 = vpop.f32.mrb[0].mxu0
    %321 = vmatprep.mubr.bf16.mxu0 %v156
    %322 = vmatmul.mubr.bf16.gmra.mrb[0].mxu0 %v155
    %v323 = vpop.f32.mrb[0].mxu0
    %v324 = vadd.f32 %v103, %v323
    %v325 = vpop.f32.mrb[0].mxu0
    %v326 = vpop.f32.mrb[0].mxu0
    %v327 = vadd.f32 %v103, %v326
    %v328 = vpop.f32.mrb[0].mxu0
    %329 = vmatprep.mubr.bf16.mxu0 %v158
    %330 = vmatmul.mubr.bf16.gmra.mrb[0].mxu0 %v157
    %v331 = vpop.f32.mrb[0].mxu0
    %v332 = vadd.f32 %v103, %v331
    %v333 = vpop.f32.mrb[0].mxu0
    %v334 = vpop.f32.mrb[0].mxu0
    %v335 = vadd.f32 %v103, %v334
    %v336 = vpop.f32.mrb[0].mxu0
    %337 = vmatprep.mubr.bf16.mxu0 %v160
    %338 = vmatmul.mubr.bf16.gmra.mrb[0].mxu0 %v159
    %v339 = vpop.f32.mrb[0].mxu0
    %v340 = vadd.f32 %v103, %v339
    %v341 = vpop.f32.mrb[0].mxu0
    %v342 = vpop.f32.mrb[0].mxu0
    %v343 = vadd.f32 %v103, %v342
    %v344 = vpop.f32.mrb[0].mxu0
    %345 = vmatprep.mubr.bf16.mxu0 %v162
    %346 = vmatmul.mubr.bf16.gmra.mrb[0].mxu0 %v161
    %v347 = vpop.f32.mrb[0].mxu0
    %v348 = vadd.f32 %v103, %v347
    %v349 = vpop.f32.mrb[0].mxu0
    %v350 = vpop.f32.mrb[0].mxu0
    %v351 = vadd.f32 %v103, %v350
    %v352 = vpop.f32.mrb[0].mxu0
    %353 = vmatprep.mubr.bf16.mxu0 %v164
    %354 = vmatmul.mubr.bf16.gmra.mrb[0].mxu0 %v163
    %v355 = vpop.f32.mrb[0].mxu0
    %v356 = vadd.f32 %v103, %v355
    %v357 = vpop.f32.mrb[0].mxu0
    %v358 = vpop.f32.mrb[0].mxu0
    %v359 = vadd.f32 %v103, %v358
    %v360 = vpop.f32.mrb[0].mxu0
    %361 = vmatprep.mubr.bf16.mxu0 %v166
    %362 = vmatmul.mubr.bf16.gmra.mrb[0].mxu0 %v165
    %v363 = vpop.f32.mrb[0].mxu0
    %v364 = vadd.f32 %v103, %v363
    %v365 = vpop.f32.mrb[0].mxu0
    %v366 = vpop.f32.mrb[0].mxu0
    %v367 = vadd.f32 %v103, %v366
    %v368 = vpop.f32.mrb[0].mxu0
    %369 = vmatprep.mubr.bf16.mxu0 %v168
    %370 = vmatmul.mubr.bf16.gmra.mrb[0].mxu0 %v167
    %v371 = vpop.f32.mrb[0].mxu0
    %v372 = vadd.f32 %v103, %v371
    %v373 = vpop.f32.mrb[0].mxu0
    %v374 = vpop.f32.mrb[0].mxu0
    %v375 = vadd.f32 %v103, %v374
    %v376 = vpop.f32.mrb[0].mxu0
    %377 = vdwg.mxu0
    %v378 = vld [vmem:[%s3] sm:$0x1]
    %v379 = vld [vmem:[%s4] sm:$0x1]
    %380 = vadd.xlane.f32.xlu0 %v316
    %v381 = vpop.xlane.xlu0 %380
    %382 = vadd.xlane.f32.xlu0 %v319
    %v383 = vpop.xlane.xlu0 %382
    %384 = vadd.xlane.f32.xlu0 %v324
    %v385 = vpop.xlane.xlu0 %384
    %386 = vadd.xlane.f32.xlu0 %v327
    %v387 = vpop.xlane.xlu0 %386
    %388 = vadd.xlane.f32.xlu0 %v332
    %v389 = vpop.xlane.xlu0 %388
    %390 = vadd.xlane.f32.xlu0 %v335
    %v391 = vpop.xlane.xlu0 %390
    %392 = vadd.xlane.f32.xlu0 %v340
    %v393 = vpop.xlane.xlu0 %392
    %394 = vadd.xlane.f32.xlu0 %v343
    %v395 = vpop.xlane.xlu0 %394
    %396 = vadd.xlane.f32.xlu0 %v348
    %v397 = vpop.xlane.xlu0 %396
    %398 = vadd.xlane.f32.xlu0 %v351
    %v399 = vpop.xlane.xlu0 %398
    %400 = vadd.xlane.f32.xlu0 %v356
    %v401 = vpop.xlane.xlu0 %400
    %402 = vadd.xlane.f32.xlu0 %v359
    %v403 = vpop.xlane.xlu0 %402
    %404 = vadd.xlane.f32.xlu0 %v364
    %v405 = vpop.xlane.xlu0 %404
    %406 = vadd.xlane.f32.xlu0 %v367
    %v407 = vpop.xlane.xlu0 %406
    %408 = vadd.xlane.f32.xlu0 %v372
    %v409 = vpop.xlane.xlu0 %408
    %410 = vadd.xlane.f32.xlu0 %v375
    %v411 = vpop.xlane.xlu0 %410
    %v412 = vrcp.pop 128.0
    %v413 = vmul.f32 %v381, %v412
    %v414 = vmul.f32 %v383, %v412
    %v415 = vmul.f32 %v385, %v412
    %v416 = vmul.f32 %v387, %v412
    %v417 = vmul.f32 %v389, %v412
    %v418 = vmul.f32 %v391, %v412
    %v419 = vmul.f32 %v393, %v412
    %v420 = vmul.f32 %v395, %v412
    %v421 = vmul.f32 %v397, %v412
    %v422 = vmul.f32 %v399, %v412
    %v423 = vmul.f32 %v401, %v412
    %v424 = vmul.f32 %v403, %v412
    %v425 = vmul.f32 %v405, %v412
    %v426 = vmul.f32 %v407, %v412
    %v427 = vmul.f32 %v409, %v412
    %v428 = vmul.f32 %v411, %v412
    %v429 = vsub.f32 %v316, %v413
    %v430 = vsub.f32 %v319, %v414
    %v431 = vsub.f32 %v324, %v415
    %v432 = vsub.f32 %v327, %v416
    %v433 = vsub.f32 %v332, %v417
    %v434 = vsub.f32 %v335, %v418
    %v435 = vsub.f32 %v340, %v419
    %v436 = vsub.f32 %v343, %v420
    %v437 = vsub.f32 %v348, %v421
    %v438 = vsub.f32 %v351, %v422
    %v439 = vsub.f32 %v356, %v423
    %v440 = vsub.f32 %v359, %v424
    %v441 = vsub.f32 %v364, %v425
    %v442 = vsub.f32 %v367, %v426
    %v443 = vsub.f32 %v372, %v427
    %v444 = vsub.f32 %v375, %v428
    %v445 = vmul.f32 %v429, %v429
    %v446 = vmul.f32 %v430, %v430
    %v447 = vmul.f32 %v431, %v431
    %v448 = vmul.f32 %v432, %v432
    %v449 = vmul.f32 %v433, %v433
    %v450 = vmul.f32 %v434, %v434
    %v451 = vmul.f32 %v435, %v435
    %v452 = vmul.f32 %v436, %v436
    %v453 = vmul.f32 %v437, %v437
    %v454 = vmul.f32 %v438, %v438
    %v455 = vmul.f32 %v439, %v439
    %v456 = vmul.f32 %v440, %v440
    %v457 = vmul.f32 %v441, %v441
    %v458 = vmul.f32 %v442, %v442
    %v459 = vmul.f32 %v443, %v443
    %v460 = vmul.f32 %v444, %v444
    %461 = vadd.xlane.f32.xlu0 %v445
    %v462 = vpop.xlane.xlu0 %461
    %463 = vadd.xlane.f32.xlu0 %v446
    %v464 = vpop.xlane.xlu0 %463
    %465 = vadd.xlane.f32.xlu0 %v447
    %v466 = vpop.xlane.xlu0 %465
    %467 = vadd.xlane.f32.xlu0 %v448
    %v468 = vpop.xlane.xlu0 %467
    %469 = vadd.xlane.f32.xlu0 %v449
    %v470 = vpop.xlane.xlu0 %469
    %471 = vadd.xlane.f32.xlu0 %v450
    %v472 = vpop.xlane.xlu0 %471
    %473 = vadd.xlane.f32.xlu0 %v451
    %v474 = vpop.xlane.xlu0 %473
    %475 = vadd.xlane.f32.xlu0 %v452
    %v476 = vpop.xlane.xlu0 %475
    %477 = vadd.xlane.f32.xlu0 %v453
    %v478 = vpop.xlane.xlu0 %477
    %479 = vadd.xlane.f32.xlu0 %v454
    %v480 = vpop.xlane.xlu0 %479
    %481 = vadd.xlane.f32.xlu0 %v455
    %v482 = vpop.xlane.xlu0 %481
    %483 = vadd.xlane.f32.xlu0 %v456
    %v484 = vpop.xlane.xlu0 %483
    %485 = vadd.xlane.f32.xlu0 %v457
    %v486 = vpop.xlane.xlu0 %485
    %487 = vadd.xlane.f32.xlu0 %v458
    %v488 = vpop.xlane.xlu0 %487
    %489 = vadd.xlane.f32.xlu0 %v459
    %v490 = vpop.xlane.xlu0 %489
    %491 = vadd.xlane.f32.xlu0 %v460
    %v492 = vpop.xlane.xlu0 %491
    %v493 = vmul.f32 %v462, %v412
    %v494 = vmul.f32 %v464, %v412
    %v495 = vmul.f32 %v466, %v412
    %v496 = vmul.f32 %v468, %v412
    %v497 = vmul.f32 %v470, %v412
    %v498 = vmul.f32 %v472, %v412
    %v499 = vmul.f32 %v474, %v412
    %v500 = vmul.f32 %v476, %v412
    %v501 = vmul.f32 %v478, %v412
    %v502 = vmul.f32 %v480, %v412
    %v503 = vmul.f32 %v482, %v412
    %v504 = vmul.f32 %v484, %v412
    %v505 = vmul.f32 %v486, %v412
    %v506 = vmul.f32 %v488, %v412
    %v507 = vmul.f32 %v490, %v412
    %v508 = vmul.f32 %v492, %v412
    %v509 = vadd.f32 %v493, 1e-12
    %v510 = vadd.f32 %v494, 1e-12
    %v511 = vadd.f32 %v495, 1e-12
    %v512 = vadd.f32 %v496, 1e-12
    %v513 = vadd.f32 %v497, 1e-12
    %v514 = vadd.f32 %v498, 1e-12
    %v515 = vadd.f32 %v499, 1e-12
    %v516 = vadd.f32 %v500, 1e-12
    %v517 = vadd.f32 %v501, 1e-12
    %v518 = vadd.f32 %v502, 1e-12
    %v519 = vadd.f32 %v503, 1e-12
    %v520 = vadd.f32 %v504, 1e-12
    %v521 = vadd.f32 %v505, 1e-12
    %v522 = vadd.f32 %v506, 1e-12
    %v523 = vadd.f32 %v507, 1e-12
    %v524 = vadd.f32 %v508, 1e-12
    %v525 = vrsqrt.pop %v509
    %v526 = vrsqrt.pop %v510
    %v527 = vrsqrt.pop %v511
    %v528 = vrsqrt.pop %v512
    %v529 = vrsqrt.pop %v513
    %v530 = vrsqrt.pop %v514
    %v531 = vrsqrt.pop %v515
    %v532 = vrsqrt.pop %v516
    %v533 = vrsqrt.pop %v517
    %v534 = vrsqrt.pop %v518
    %v535 = vrsqrt.pop %v519
    %v536 = vrsqrt.pop %v520
    %v537 = vrsqrt.pop %v521
    %v538 = vrsqrt.pop %v522
    %v539 = vrsqrt.pop %v523
    %v540 = vrsqrt.pop %v524
    %v541 = vmul.f32 %v429, %v525
    %v542 = vmul.f32 %v430, %v526
    %v543 = vmul.f32 %v431, %v527
    %v544 = vmul.f32 %v432, %v528
    %v545 = vmul.f32 %v433, %v529
    %v546 = vmul.f32 %v434, %v530
    %v547 = vmul.f32 %v435, %v531
    %v548 = vmul.f32 %v436, %v532
    %v549 = vmul.f32 %v437, %v533
    %v550 = vmul.f32 %v438, %v534
    %v551 = vmul.f32 %v439, %v535
    %v552 = vmul.f32 %v440, %v536
    %v553 = vmul.f32 %v441, %v537
    %v554 = vmul.f32 %v442, %v538
    %v555 = vmul.f32 %v443, %v539
    %v556 = vmul.f32 %v444, %v540
    %v558 = vlaneseq
    %v559 = vshrl.u32 %v558, 7
    %v560 = vsub.s32 0, %v559
    %v561 = vrot.slane %v378, %v560
    %v563 = vmul.f32 %v541, %v561
    %v564 = vmul.f32 %v542, %v561
    %v565 = vmul.f32 %v543, %v561
    %v566 = vmul.f32 %v544, %v561
    %v567 = vmul.f32 %v545, %v561
    %v568 = vmul.f32 %v546, %v561
    %v569 = vmul.f32 %v547, %v561
    %v570 = vmul.f32 %v548, %v561
    %v571 = vmul.f32 %v549, %v561
    %v572 = vmul.f32 %v550, %v561
    %v573 = vmul.f32 %v551, %v561
    %v574 = vmul.f32 %v552, %v561
    %v575 = vmul.f32 %v553, %v561
    %v576 = vmul.f32 %v554, %v561
    %v577 = vmul.f32 %v555, %v561
    %v578 = vmul.f32 %v556, %v561
    %v580 = vlaneseq
    %v581 = vshrl.u32 %v580, 7
    %v582 = vsub.s32 0, %v581
    %v583 = vrot.slane %v379, %v582
    %v585 = vadd.f32 %v563, %v583
    %v586 = vadd.f32 %v564, %v583
    %v587 = vadd.f32 %v565, %v583
    %v588 = vadd.f32 %v566, %v583
    %v589 = vadd.f32 %v567, %v583
    %v590 = vadd.f32 %v568, %v583
    %v591 = vadd.f32 %v569, %v583
    %v592 = vadd.f32 %v570, %v583
    %v593 = vadd.f32 %v571, %v583
    %v594 = vadd.f32 %v572, %v583
    %v595 = vadd.f32 %v573, %v583
    %v596 = vadd.f32 %v574, %v583
    %v597 = vadd.f32 %v575, %v583
    %v598 = vadd.f32 %v576, %v583
    %v599 = vadd.f32 %v577, %v583
    %v600 = vadd.f32 %v578, %v583
    %v601 = vpack.c.bf16 %v586, %v585
    %v602 = vpack.c.bf16 %v588, %v587
    %v603 = vpack.c.bf16 %v590, %v589
    %v604 = vpack.c.bf16 %v592, %v591
    %v605 = vpack.c.bf16 %v594, %v593
    %v606 = vpack.c.bf16 %v596, %v595
    %v607 = vpack.c.bf16 %v598, %v597
    %v608 = vpack.c.bf16 %v600, %v599
    %v617 = vunpack.c.l.b16 %v601
    %v618 = vunpack.c.h.b16 %v601
    %v619 = vunpack.c.l.b16 %v602
    %v620 = vunpack.c.h.b16 %v602
    %v621 = vunpack.c.l.b16 %v603
    %v622 = vunpack.c.h.b16 %v603
    %v623 = vunpack.c.l.b16 %v604
    %v624 = vunpack.c.h.b16 %v604
    %v625 = vunpack.c.l.b16 %v605
    %v626 = vunpack.c.h.b16 %v605
    %v627 = vunpack.c.l.b16 %v606
    %v628 = vunpack.c.h.b16 %v606
    %v629 = vunpack.c.l.b16 %v607
    %v630 = vunpack.c.h.b16 %v607
    %v631 = vunpack.c.l.b16 %v608
    %v632 = vunpack.c.h.b16 %v608
    %v633 = vpack.c.b16 %v617, %v617
    %v634 = vpack.c.b16 %v618, %v618
    %v635 = vpack.c.b16 %v619, %v619
    %v636 = vpack.c.b16 %v620, %v620
    %v637 = vpack.c.b16 %v621, %v621
    %v638 = vpack.c.b16 %v622, %v622
    %v639 = vpack.c.b16 %v623, %v623
    %v640 = vpack.c.b16 %v624, %v624
    %v641 = vpack.c.b16 %v625, %v625
    %v642 = vpack.c.b16 %v626, %v626
    %v643 = vpack.c.b16 %v627, %v627
    %v644 = vpack.c.b16 %v628, %v628
    %v645 = vpack.c.b16 %v629, %v629
    %v646 = vpack.c.b16 %v630, %v630
    %v647 = vpack.c.b16 %v631, %v631
    %v648 = vpack.c.b16 %v632, %v632
    %665 = vst [vmem:[#allocation7] sm:$0xf] %v633
    %666 = vst [vmem:[#allocation7 + $0x4] sm:$0xf] %v634
    %667 = vst [vmem:[#allocation7 + $0x8] sm:$0xf] %v635
    %668 = vst [vmem:[#allocation7 + $0xc] sm:$0xf] %v636
    %669 = vst [vmem:[#allocation7 + $0x10] sm:$0xf] %v637
    %670 = vst [vmem:[#allocation7 + $0x14] sm:$0xf] %v638
    %671 = vst [vmem:[#allocation7 + $0x18] sm:$0xf] %v639
    %672 = vst [vmem:[#allocation7 + $0x1c] sm:$0xf] %v640
    %673 = vst [vmem:[#allocation7 + $0x20] sm:$0xf] %v641
    %674 = vst [vmem:[#allocation7 + $0x24] sm:$0xf] %v642
    %675 = vst [vmem:[#allocation7 + $0x28] sm:$0xf] %v643
    %676 = vst [vmem:[#allocation7 + $0x2c] sm:$0xf] %v644
    %677 = vst [vmem:[#allocation7 + $0x30] sm:$0xf] %v645
    %678 = vst [vmem:[#allocation7 + $0x34] sm:$0xf] %v646
    %679 = vst [vmem:[#allocation7 + $0x38] sm:$0xf] %v647
    %680 = vst [vmem:[#allocation7 + $0x3c] sm:$0xf] %v648
    // Predicated region
    $region30: #{tpu_custom_call.1} parent=1 // pred_check
      _
    $region31: #{tpu_custom_call.1} parent=1 // pred_check_branch
      %682 = sbr.rel (0) target = $region33
    $region32: #{tpu_custom_call.1} parent=1 // pred_region
      %s684 = ssub.s32 1024, 1024
      %685 = vsyncadd [#allocation4], %s684
      %s686 = sshll.u32 [#allocation7], 4
      %s687 = int_to_ptr.vmem [resolvable:$true] %s686
      %692 = dma.vmem_to_hbm [thread:$0]  %s687, 1024, %s5, [#allocation4], 64, 64, 4
    $region33: #{tpu_custom_call.1} parent=1 // pred_fallthru
      _
    // Predicated region
    $region34: #{tpu_custom_call.1} parent=1 // pred_check
      _
    $region35: #{tpu_custom_call.1} parent=1 // pred_check_branch
      %694 = sbr.rel (0) target = $region37
    $region36: #{tpu_custom_call.1} parent=1 // pred_region
      %695 = dma.done [#allocation4], 1024
    $region37: #{tpu_custom_call.1} parent=1 // pred_fallthru
      _
    %696 = vsyncpa [#allocation3], 1
    %697 = vsyncpa [#allocation6], 1
    %698 = vsyncpa [#allocation4], 1

</llo_original>
